<compile_context>
chip_gen: v5e
topology: v5e:2x2
jax: 0.10.0
libtpu: 0.0.40
codegen_flags: <defaults>
</compile_context>

<pallas_src>
import jax
import jax.numpy as jnp
from jax.experimental import pallas as pl
from jax.experimental.pallas import tpu as pltpu


def _round_up(x, m):
    return ((x + m - 1) // m) * m


def decoder_kernel(x_ref, w1_ref, b1_ref, w2_ref, b2_ref, o_ref):
    x = x_ref[...]                       # (TM, 3)  f32
    w1 = w1_ref[...]                     # (3, 64)  f32

    # Layer 1 (K=3): VPU broadcast-FMAs; avoids a degenerate MXU matmul.
    h = (x[:, 0:1] * w1[0:1, :]
         + x[:, 1:2] * w1[1:2, :]
         + x[:, 2:3] * w1[2:3, :]
         + b1_ref[...])                  # (TM, 64)
    h = jnp.maximum(h, 0.0)              # ReLU

    # Layer 2: MXU matmul, bf16 weights, f32 accumulation, lane-dense N=896.
    out = jnp.dot(h.astype(w2_ref.dtype), w2_ref[...],
                  preferred_element_type=jnp.float32)
    o_ref[...] = (out + b2_ref[...]).astype(o_ref.dtype)   # (TM, 896)


def decoder_forward(x, w1, b1, w2, b2, *, block_m=256,
                    weight_dtype=jnp.bfloat16):
    """x: (B, 3) f32; w1: (3, 64); b1: (1, 64); w2: (64, 784); b2: (1, 784)."""
    B, in_dim = x.shape
    hid = w1.shape[1]
    out_dim = w2.shape[1]

    # --- Lane-dense output: pad N (784) up to a multiple of 128 (-> 896). ---
    n_padded = _round_up(out_dim, 128)
    w2_p = jnp.pad(w2, ((0, 0), (0, n_padded - out_dim))).astype(weight_dtype)
    b2_p = jnp.pad(b2, ((0, 0), (0, n_padded - out_dim))).astype(jnp.float32)

    w1 = w1.astype(jnp.float32)
    b1 = b1.astype(jnp.float32)
    x = x.astype(jnp.float32)

    # --- Batch tiling: keep weights VMEM-resident, pipeline x/out DMA. ---
    tm = min(block_m, _round_up(B, 8))          # sublane-aligned batch tile
    b_padded = _round_up(B, tm)
    if b_padded != B:
        x = jnp.pad(x, ((0, b_padded - B), (0, 0)))
    grid = (b_padded // tm,)

    flops = 2 * b_padded * (in_dim * hid + hid * n_padded)
    bytes_accessed = (x.size * 4 + w1.size * 4 + b1.size * 4
                      + w2_p.size * w2_p.dtype.itemsize + b2_p.size * 4
                      + b_padded * n_padded * 4)

    out = pl.pallas_call(
        decoder_kernel,
        out_shape=jax.ShapeDtypeStruct((b_padded, n_padded), jnp.float32),
        grid=grid,
        in_specs=[
            pl.BlockSpec((tm, in_dim), lambda i: (i, 0)),        # x tile
            pl.BlockSpec((in_dim, hid), lambda i: (0, 0)),       # w1 (resident)
            pl.BlockSpec((1, hid), lambda i: (0, 0)),            # b1 (resident)
            pl.BlockSpec((hid, n_padded), lambda i: (0, 0)),     # w2 (resident)
            pl.BlockSpec((1, n_padded), lambda i: (0, 0)),       # b2 (resident)
        ],
        out_specs=pl.BlockSpec((tm, n_padded), lambda i: (i, 0)),
        compiler_params=pltpu.CompilerParams(
            dimension_semantics=("parallel",)),
        cost_estimate=pl.CostEstimate(flops=flops, transcendentals=0,
                                      bytes_accessed=bytes_accessed),
    )(x, w1, b1, w2_p, b2_p)

    return out[:B, :out_dim]


def init_params(key):
    """Deterministic init mimicking PyTorch nn.Linear default:
    U(-1/sqrt(fan_in), 1/sqrt(fan_in)) for both weight and bias."""
    k1, k2, k3, k4 = jax.random.split(key, 4)
    in1, hid, out = 3, 64, 28 * 28

    bound1 = 1.0 / jnp.sqrt(in1)
    w1 = jax.random.uniform(k1, (in1, hid), jnp.float32, -bound1, bound1)
    b1 = jax.random.uniform(k2, (1, hid), jnp.float32, -bound1, bound1)

    bound2 = 1.0 / jnp.sqrt(hid)
    w2 = jax.random.uniform(k3, (hid, out), jnp.float32, -bound2, bound2)
    b2 = jax.random.uniform(k4, (1, out), jnp.float32, -bound2, bound2)
    return w1, b1, w2, b2


if __name__ == "__main__":
    key = jax.random.PRNGKey(0)
    kx, kp = jax.random.split(key)

    B = 8
    x = jax.random.normal(kx, (B, 3), dtype=jnp.float32)   # latent input
    w1, b1, w2, b2 = init_params(kp)

    fwd = jax.jit(decoder_forward)
    out = jax.block_until_ready(fwd(x, w1, b1, w2, b2))

    # Reference in plain f32 JAX. Kernel uses bf16 weights for layer 2 (with
    # f32 accumulation), so the tolerance is loosened to bf16 level.
    h_ref = jnp.maximum(x @ w1 + b1, 0.0)
    ref = h_ref @ w2 + b2
    assert out.shape == (B, 28 * 28)
    assert jnp.allclose(out, ref, atol=5e-2, rtol=5e-2), (
        float(jnp.max(jnp.abs(out - ref))))

    print("KERNEL_OK")
</pallas_src>

<mosaic_0001>
module attributes {stable_mosaic.version = 11 : i64} {
  func.func @decoder_kernel(%arg0: i32, %arg1: memref<8x3xf32, #tpu.memory_space<vmem>>, %arg2: memref<3x64xf32, #tpu.memory_space<vmem>>, %arg3: memref<1x64xf32, #tpu.memory_space<vmem>>, %arg4: memref<64x896xbf16, #tpu.memory_space<vmem>>, %arg5: memref<1x896xf32, #tpu.memory_space<vmem>>, %arg6: memref<8x896xf32, #tpu.memory_space<vmem>>) attributes {dimension_semantics = [#tpu.dimension_semantics<parallel>], iteration_bounds = array<i64: 1>, scalar_prefetch = 0 : i64, scratch_operands = 0 : i64, tpu.core_type = #tpu.core_type<tc>, window_params = [{transform_indices = @transform_0, window_bounds = array<i64: 8, 3>}, {pipeline_mode = #tpu.pipeline_mode<synchronous>, transform_indices = @transform_1, window_bounds = array<i64: 3, 64>}, {pipeline_mode = #tpu.pipeline_mode<synchronous>, transform_indices = @transform_2, window_bounds = array<i64: 1, 64>}, {pipeline_mode = #tpu.pipeline_mode<synchronous>, transform_indices = @transform_3, window_bounds = array<i64: 64, 896>}, {pipeline_mode = #tpu.pipeline_mode<synchronous>, transform_indices = @transform_4, window_bounds = array<i64: 1, 896>}, {transform_indices = @transform_5, window_bounds = array<i64: 8, 896>}]} {
    %c0 = arith.constant 0 : index
    %c0_0 = arith.constant 0 : index
    %0 = vector.load %arg1[%c0, %c0_0] : memref<8x3xf32, #tpu.memory_space<vmem>>, vector<8x3xf32>
    %c0_1 = arith.constant 0 : index
    %c0_2 = arith.constant 0 : index
    %1 = vector.load %arg2[%c0_1, %c0_2] : memref<3x64xf32, #tpu.memory_space<vmem>>, vector<3x64xf32>
    %2 = vector.extract_strided_slice %0 {offsets = [0, 0], sizes = [8, 1], strides = [1, 1]} : vector<8x3xf32> to vector<8x1xf32>
    %3 = vector.extract_strided_slice %1 {offsets = [0, 0], sizes = [1, 64], strides = [1, 1]} : vector<3x64xf32> to vector<1x64xf32>
    %4 = vector.broadcast %2 : vector<8x1xf32> to vector<8x64xf32>
    %5 = vector.broadcast %3 : vector<1x64xf32> to vector<8x64xf32>
    %6 = arith.mulf %4, %5 : vector<8x64xf32>
    %7 = vector.extract_strided_slice %0 {offsets = [0, 1], sizes = [8, 1], strides = [1, 1]} : vector<8x3xf32> to vector<8x1xf32>
    %8 = vector.extract_strided_slice %1 {offsets = [1, 0], sizes = [1, 64], strides = [1, 1]} : vector<3x64xf32> to vector<1x64xf32>
    %9 = vector.broadcast %7 : vector<8x1xf32> to vector<8x64xf32>
    %10 = vector.broadcast %8 : vector<1x64xf32> to vector<8x64xf32>
    %11 = arith.mulf %9, %10 : vector<8x64xf32>
    %12 = arith.addf %6, %11 : vector<8x64xf32>
    %13 = vector.extract_strided_slice %0 {offsets = [0, 2], sizes = [8, 1], strides = [1, 1]} : vector<8x3xf32> to vector<8x1xf32>
    %14 = vector.extract_strided_slice %1 {offsets = [2, 0], sizes = [1, 64], strides = [1, 1]} : vector<3x64xf32> to vector<1x64xf32>
    %15 = vector.broadcast %13 : vector<8x1xf32> to vector<8x64xf32>
    %16 = vector.broadcast %14 : vector<1x64xf32> to vector<8x64xf32>
    %17 = arith.mulf %15, %16 : vector<8x64xf32>
    %18 = arith.addf %12, %17 : vector<8x64xf32>
    %c0_3 = arith.constant 0 : index
    %c0_4 = arith.constant 0 : index
    %19 = vector.load %arg3[%c0_3, %c0_4] : memref<1x64xf32, #tpu.memory_space<vmem>>, vector<1x64xf32>
    %20 = vector.broadcast %19 : vector<1x64xf32> to vector<8x64xf32>
    %21 = arith.addf %18, %20 : vector<8x64xf32>
    %cst = arith.constant 0.000000e+00 : f32
    %22 = vector.broadcast %cst : f32 to vector<8x64xf32>
    %23 = arith.maximumf %21, %22 : vector<8x64xf32>
    %24 = arith.truncf %23 : vector<8x64xf32> to vector<8x64xbf16>
    %c0_5 = arith.constant 0 : index
    %c0_6 = arith.constant 0 : index
    %25 = vector.load %arg4[%c0_5, %c0_6] : memref<64x896xbf16, #tpu.memory_space<vmem>>, vector<64x896xbf16>
    %cst_7 = arith.constant dense<0.000000e+00> : vector<8x896xf32>
    %26 = tpu.matmul %24, %25, %cst_7 {dimension_numbers = #tpu.dot_dimension_numbers<[1], [0], [0], [1], [0, 0, 1, 1], [], []>} : vector<8x64xbf16>, vector<64x896xbf16>, vector<8x896xf32> -> vector<8x896xf32>
    %c0_8 = arith.constant 0 : index
    %c0_9 = arith.constant 0 : index
    %27 = vector.load %arg5[%c0_8, %c0_9] : memref<1x896xf32, #tpu.memory_space<vmem>>, vector<1x896xf32>
    %28 = vector.broadcast %27 : vector<1x896xf32> to vector<8x896xf32>
    %29 = arith.addf %26, %28 : vector<8x896xf32>
    %c0_10 = arith.constant 0 : index
    %c0_11 = arith.constant 0 : index
    %30 = vector.load %arg6[%c0_10, %c0_11] : memref<8x896xf32, #tpu.memory_space<vmem>>, vector<8x896xf32>
    tpu.vector_store %arg6[%c0_10, %c0_11], %29 {strides = array<i32>} : memref<8x896xf32, #tpu.memory_space<vmem>>, vector<8x896xf32>,
    return
  }
  func.func @transform_0(%arg0: i32) -> (i32, i32) {
    %c0_i32 = arith.constant 0 : i32
    %c0_i32_0 = arith.constant 0 : i32
    return %arg0, %c0_i32 : i32, i32
  }
  func.func @transform_1(%arg0: i32) -> (i32, i32) {
    %c0_i32 = arith.constant 0 : i32
    %c0_i32_0 = arith.constant 0 : i32
    %c0_i32_1 = arith.constant 0 : i32
    return %c0_i32, %c0_i32_0 : i32, i32
  }
  func.func @transform_2(%arg0: i32) -> (i32, i32) {
    %c0_i32 = arith.constant 0 : i32
    %c0_i32_0 = arith.constant 0 : i32
    %c0_i32_1 = arith.constant 0 : i32
    return %c0_i32, %c0_i32_0 : i32, i32
  }
  func.func @transform_3(%arg0: i32) -> (i32, i32) {
    %c0_i32 = arith.constant 0 : i32
    %c0_i32_0 = arith.constant 0 : i32
    %c0_i32_1 = arith.constant 0 : i32
    return %c0_i32, %c0_i32_0 : i32, i32
  }
  func.func @transform_4(%arg0: i32) -> (i32, i32) {
    %c0_i32 = arith.constant 0 : i32
    %c0_i32_0 = arith.constant 0 : i32
    %c0_i32_1 = arith.constant 0 : i32
    return %c0_i32, %c0_i32_0 : i32, i32
  }
  func.func @transform_5(%arg0: i32) -> (i32, i32) {
    %c0_i32 = arith.constant 0 : i32
    %c0_i32_0 = arith.constant 0 : i32
    return %arg0, %c0_i32 : i32, i32
  }
}

</mosaic_0001>

<llo_original>
// kernel: decoder_forward.1
$region0: #{decoder_forward.1}
  #allocation0 [shape = 'u32[]', space=smem, size = 0x4, offset = 0x4, fixed_abs, tag = 'smem constant byte address 0x4 - core index']
  #allocation1 [shape = 'u32[72,128]{1,0:T(1,128)}', space=vmem, size = 0x9000, scoped, tag = 'internal scratch']
  %s0 = inlined_call_operand.vmem [shape: f32[8,3], index: 0, kind: input, shape index: {}]
  %s1 = inlined_call_operand.vmem [shape: f32[3,64], index: 1, kind: input, shape index: {}]
  %s2 = inlined_call_operand.vmem [shape: f32[1,64], index: 2, kind: input, shape index: {}]
  %s3 = inlined_call_operand.vmem [shape: bf16[64,896], index: 3, kind: input, shape index: {}]
  %s4 = inlined_call_operand.vmem [shape: f32[1,896], index: 4, kind: input, shape index: {}]
  %s5 = inlined_call_operand.hbm [shape: f32[8,896], index: 5, kind: output, shape index: {}]
  %s6 = sld [smem:[#allocation0]]
  $region30: #{decoder_forward.1} parent=0
    _
  %s8 = ssub.s32 1, %s6
  %s9 = scalar_select 0, %s8, %s6
  $region1: #{decoder_forward.1} parent=0
    #allocation2 [shape = 'u8[28672]{0}', space=vmem, size = 0x7000, scoped, tag = 'output window, operand 0, single buffered']
    #allocation3 [shape = 's32[1]{0}', space=sflag, size = 0x4, scoped, tag = 'scoped memory for decoder_forward.1']
    %10 = vsyncpa [#allocation3], 0
    // Predicated region
    $region2: #{decoder_forward.1} parent=1 // pred_check
      _
    $region3: #{decoder_forward.1} parent=1 // pred_check_branch
      %12 = sbr.rel (0) target = $region5
    $region4: #{decoder_forward.1} parent=1 // pred_region
      _
    $region5: #{decoder_forward.1} parent=1 // pred_fallthru
      _
    // Predicated region
    $region6: #{decoder_forward.1} parent=1 // pred_check
      _
    $region7: #{decoder_forward.1} parent=1 // pred_check_branch
      %14 = sbr.rel (0) target = $region9
    $region8: #{decoder_forward.1} parent=1 // pred_region
      _
    $region9: #{decoder_forward.1} parent=1 // pred_fallthru
      _
    // Predicated region
    $region10: #{decoder_forward.1} parent=1 // pred_check
      _
    $region11: #{decoder_forward.1} parent=1 // pred_check_branch
      %16 = sbr.rel (0) target = $region13
    $region12: #{decoder_forward.1} parent=1 // pred_region
      _
    $region13: #{decoder_forward.1} parent=1 // pred_fallthru
      _
    // Predicated region
    $region14: #{decoder_forward.1} parent=1 // pred_check
      _
    $region15: #{decoder_forward.1} parent=1 // pred_check_branch
      %18 = sbr.rel (0) target = $region17
    $region16: #{decoder_forward.1} parent=1 // pred_region
      _
    $region17: #{decoder_forward.1} parent=1 // pred_fallthru
      _
    // Predicated region
    $region18: #{decoder_forward.1} parent=1 // pred_check
      _
    $region19: #{decoder_forward.1} parent=1 // pred_check_branch
      %20 = sbr.rel (0) target = $region21
    $region20: #{decoder_forward.1} parent=1 // pred_region
      _
    $region21: #{decoder_forward.1} parent=1 // pred_fallthru
      _
    %v22 = vld [vmem:[%s0] sm:$0xff]
    %v23 = vld [vmem:[%s1] sm:$0x7]
    %25 = vset.pattern.permute.xlu0 0
    %26 = vperm.xlu0 %25, %v22
    %v27 = vpop.permute.xlu0 %26
    %v29 = vperm.slane %v23, 0
    %v30 = vmul.f32 %v27, %v29
    %31 = vset.pattern.permute.xlu0 1
    %32 = vperm.xlu0 %31, %v22
    %v33 = vpop.permute.xlu0 %32
    %v35 = vperm.slane %v23, 1
    %v36 = vmul.f32 %v33, %v35
    %v37 = vadd.f32 %v30, %v36
    %38 = vset.pattern.permute.xlu0 2
    %39 = vperm.xlu0 %38, %v22
    %v40 = vpop.permute.xlu0 %39
    %v42 = vperm.slane %v23, 2
    %v43 = vmul.f32 %v40, %v42
    %v44 = vadd.f32 %v37, %v43
    %v45 = vld [vmem:[%s2] sm:$0x1]
    %v47 = vperm.slane %v45, 0
    %v49 = vadd.f32 %v44, %v47
    %v50 = vmax.f32 %v49, 0.0
    %v51 = vpack.c.bf16 %v50, %v50
    %v52 = vld [vmem:[%s3] sm:$0xff]
    %v53 = vld [vmem:[%s3 + $0x8] sm:$0xff]
    %v54 = vld [vmem:[%s3 + $0x10] sm:$0xff]
    %v55 = vld [vmem:[%s3 + $0x18] sm:$0xf]
    %v56 = vld [vmem:[%s3 + $0x1c] sm:$0xff]
    %v57 = vld [vmem:[%s3 + $0x24] sm:$0xff]
    %v58 = vld [vmem:[%s3 + $0x2c] sm:$0xff]
    %v59 = vld [vmem:[%s3 + $0x34] sm:$0xf]
    %v60 = vld [vmem:[%s3 + $0x38] sm:$0xff]
    %v61 = vld [vmem:[%s3 + $0x40] sm:$0xff]
    %v62 = vld [vmem:[%s3 + $0x48] sm:$0xff]
    %v63 = vld [vmem:[%s3 + $0x50] sm:$0xf]
    %v64 = vld [vmem:[%s3 + $0x54] sm:$0xff]
    %v65 = vld [vmem:[%s3 + $0x5c] sm:$0xff]
    %v66 = vld [vmem:[%s3 + $0x64] sm:$0xff]
    %v67 = vld [vmem:[%s3 + $0x6c] sm:$0xf]
    %v68 = vld [vmem:[%s3 + $0x70] sm:$0xff]
    %v69 = vld [vmem:[%s3 + $0x78] sm:$0xff]
    %v70 = vld [vmem:[%s3 + $0x80] sm:$0xff]
    %v71 = vld [vmem:[%s3 + $0x88] sm:$0xf]
    %v72 = vld [vmem:[%s3 + $0x8c] sm:$0xff]
    %v73 = vld [vmem:[%s3 + $0x94] sm:$0xff]
    %v74 = vld [vmem:[%s3 + $0x9c] sm:$0xff]
    %v75 = vld [vmem:[%s3 + $0xa4] sm:$0xf]
    %v76 = vld [vmem:[%s3 + $0xa8] sm:$0xff]
    %v77 = vld [vmem:[%s3 + $0xb0] sm:$0xff]
    %v78 = vld [vmem:[%s3 + $0xb8] sm:$0xff]
    %v79 = vld [vmem:[%s3 + $0xc0] sm:$0xf]
    %v80 = vld [vmem:[%s3 + $0xc4] sm:$0xff]
    %v81 = vld [vmem:[%s3 + $0xcc] sm:$0xff]
    %v82 = vld [vmem:[%s3 + $0xd4] sm:$0xff]
    %v83 = vld [vmem:[%s3 + $0xdc] sm:$0xf]
    %v84 = vld [vmem:[%s4] sm:$0xff]
    %v86 = vperm.slane %v84, 0
    %v87 = vperm.slane %v84, 1
    %v88 = vperm.slane %v84, 2
    %v89 = vperm.slane %v84, 3
    %v90 = vperm.slane %v84, 4
    %v91 = vperm.slane %v84, 5
    %v92 = vperm.slane %v84, 6
    %v132 = vunpack.c.l.b16 %v52
    %v133 = vunpack.c.h.b16 %v52
    %v134 = vunpack.c.l.b16 %v53
    %v135 = vunpack.c.h.b16 %v53
    %v136 = vunpack.c.l.b16 %v54
    %v137 = vunpack.c.h.b16 %v54
    %v138 = vunpack.c.l.b16 %v55
    %v139 = vunpack.c.l.b16 %v56
    %v140 = vunpack.c.h.b16 %v56
    %v141 = vunpack.c.l.b16 %v57
    %v142 = vunpack.c.h.b16 %v57
    %v143 = vunpack.c.l.b16 %v58
    %v144 = vunpack.c.h.b16 %v58
    %v145 = vunpack.c.l.b16 %v59
    %v146 = vunpack.c.l.b16 %v60
    %v147 = vunpack.c.h.b16 %v60
    %v148 = vunpack.c.l.b16 %v61
    %v149 = vunpack.c.h.b16 %v61
    %v150 = vunpack.c.l.b16 %v62
    %v151 = vunpack.c.h.b16 %v62
    %v152 = vunpack.c.l.b16 %v63
    %v153 = vunpack.c.l.b16 %v64
    %v154 = vunpack.c.h.b16 %v64
    %v155 = vunpack.c.l.b16 %v65
    %v156 = vunpack.c.h.b16 %v65
    %v157 = vunpack.c.l.b16 %v66
    %v158 = vunpack.c.h.b16 %v66
    %v159 = vunpack.c.l.b16 %v67
    %v160 = vunpack.c.l.b16 %v68
    %v161 = vunpack.c.h.b16 %v68
    %v162 = vunpack.c.l.b16 %v69
    %v163 = vunpack.c.h.b16 %v69
    %v164 = vunpack.c.l.b16 %v70
    %v165 = vunpack.c.h.b16 %v70
    %v166 = vunpack.c.l.b16 %v71
    %v167 = vunpack.c.l.b16 %v72
    %v168 = vunpack.c.h.b16 %v72
    %v169 = vunpack.c.l.b16 %v73
    %v170 = vunpack.c.h.b16 %v73
    %v171 = vunpack.c.l.b16 %v74
    %v172 = vunpack.c.h.b16 %v74
    %v173 = vunpack.c.l.b16 %v75
    %v174 = vunpack.c.l.b16 %v76
    %v175 = vunpack.c.h.b16 %v76
    %v176 = vunpack.c.l.b16 %v77
    %v177 = vunpack.c.h.b16 %v77
    %v178 = vunpack.c.l.b16 %v78
    %v179 = vunpack.c.h.b16 %v78
    %v180 = vunpack.c.l.b16 %v79
    %v181 = vunpack.c.l.b16 %v80
    %v182 = vunpack.c.h.b16 %v80
    %v183 = vunpack.c.l.b16 %v81
    %v184 = vunpack.c.h.b16 %v81
    %v185 = vunpack.c.l.b16 %v82
    %v186 = vunpack.c.h.b16 %v82
    %v187 = vunpack.c.l.b16 %v83
    %v188 = vpack.c.b16 %v139, %v132
    %v189 = vpack.c.b16 %v140, %v133
    %v190 = vpack.c.b16 %v141, %v134
    %v191 = vpack.c.b16 %v142, %v135
    %v192 = vpack.c.b16 %v143, %v136
    %v193 = vpack.c.b16 %v144, %v137
    %v194 = vpack.c.b16 %v145, %v138
    %v195 = vpack.c.b16 %v153, %v146
    %v196 = vpack.c.b16 %v154, %v147
    %v197 = vpack.c.b16 %v155, %v148
    %v198 = vpack.c.b16 %v156, %v149
    %v199 = vpack.c.b16 %v157, %v150
    %v200 = vpack.c.b16 %v158, %v151
    %v201 = vpack.c.b16 %v159, %v152
    %v202 = vpack.c.b16 %v167, %v160
    %v203 = vpack.c.b16 %v168, %v161
    %v204 = vpack.c.b16 %v169, %v162
    %v205 = vpack.c.b16 %v170, %v163
    %v206 = vpack.c.b16 %v171, %v164
    %v207 = vpack.c.b16 %v172, %v165
    %v208 = vpack.c.b16 %v173, %v166
    %v209 = vpack.c.b16 %v181, %v174
    %v210 = vpack.c.b16 %v182, %v175
    %v211 = vpack.c.b16 %v183, %v176
    %v212 = vpack.c.b16 %v184, %v177
    %v213 = vpack.c.b16 %v185, %v178
    %v214 = vpack.c.b16 %v186, %v179
    %v215 = vpack.c.b16 %v187, %v180
    %vm244 = vcmask 523264
    %v246 = vsel %vm244, %v51, 0
    %248 = vmatpush.bf16.msra.mxu0 0
    %249 = vmatpush.bf16.msra.mxu0 0
    %250 = vmatpush.bf16.msra.mxu0 0
    %251 = vmatpush.bf16.msra.mxu0 0
    %252 = vmatpush.bf16.msra.mxu0 %v209
    %253 = vmatpush.bf16.msra.mxu0 %v202
    %254 = vmatpush.bf16.msra.mxu0 %v195
    %255 = vmatpush.bf16.msra.mxu0 %v188
    %256 = vmatmul.bf16.gmra.mxu0 %v246
    %v257 = vpop.f32.mrf.mxu0
    %v258 = vadd.f32 %v86, %v257
    %v259 = vpop.f32.mrf.mxu0
    %260 = vdwg.mxu0
    %261 = vmatpush.bf16.msra.mxu0 0
    %262 = vmatpush.bf16.msra.mxu0 0
    %263 = vmatpush.bf16.msra.mxu0 0
    %264 = vmatpush.bf16.msra.mxu0 0
    %265 = vmatpush.bf16.msra.mxu0 %v210
    %266 = vmatpush.bf16.msra.mxu0 %v203
    %267 = vmatpush.bf16.msra.mxu0 %v196
    %268 = vmatpush.bf16.msra.mxu0 %v189
    %269 = vmatmul.bf16.gmra.mxu0 %v246
    %v270 = vpop.f32.mrf.mxu0
    %v271 = vadd.f32 %v87, %v270
    %v272 = vpop.f32.mrf.mxu0
    %273 = vdwg.mxu0
    %274 = vmatpush.bf16.msra.mxu0 0
    %275 = vmatpush.bf16.msra.mxu0 0
    %276 = vmatpush.bf16.msra.mxu0 0
    %277 = vmatpush.bf16.msra.mxu0 0
    %278 = vmatpush.bf16.msra.mxu0 %v211
    %279 = vmatpush.bf16.msra.mxu0 %v204
    %280 = vmatpush.bf16.msra.mxu0 %v197
    %281 = vmatpush.bf16.msra.mxu0 %v190
    %282 = vmatmul.bf16.gmra.mxu0 %v246
    %v283 = vpop.f32.mrf.mxu0
    %v284 = vadd.f32 %v88, %v283
    %v285 = vpop.f32.mrf.mxu0
    %286 = vdwg.mxu0
    %287 = vmatpush.bf16.msra.mxu0 0
    %288 = vmatpush.bf16.msra.mxu0 0
    %289 = vmatpush.bf16.msra.mxu0 0
    %290 = vmatpush.bf16.msra.mxu0 0
    %291 = vmatpush.bf16.msra.mxu0 %v212
    %292 = vmatpush.bf16.msra.mxu0 %v205
    %293 = vmatpush.bf16.msra.mxu0 %v198
    %294 = vmatpush.bf16.msra.mxu0 %v191
    %295 = vmatmul.bf16.gmra.mxu0 %v246
    %v296 = vpop.f32.mrf.mxu0
    %v297 = vadd.f32 %v89, %v296
    %v298 = vpop.f32.mrf.mxu0
    %299 = vdwg.mxu0
    %300 = vmatpush.bf16.msra.mxu0 0
    %301 = vmatpush.bf16.msra.mxu0 0
    %302 = vmatpush.bf16.msra.mxu0 0
    %303 = vmatpush.bf16.msra.mxu0 0
    %304 = vmatpush.bf16.msra.mxu0 %v213
    %305 = vmatpush.bf16.msra.mxu0 %v206
    %306 = vmatpush.bf16.msra.mxu0 %v199
    %307 = vmatpush.bf16.msra.mxu0 %v192
    %308 = vmatmul.bf16.gmra.mxu0 %v246
    %v309 = vpop.f32.mrf.mxu0
    %v310 = vadd.f32 %v90, %v309
    %v311 = vpop.f32.mrf.mxu0
    %312 = vdwg.mxu0
    %313 = vmatpush.bf16.msra.mxu0 0
    %314 = vmatpush.bf16.msra.mxu0 0
    %315 = vmatpush.bf16.msra.mxu0 0
    %316 = vmatpush.bf16.msra.mxu0 0
    %317 = vmatpush.bf16.msra.mxu0 %v214
    %318 = vmatpush.bf16.msra.mxu0 %v207
    %319 = vmatpush.bf16.msra.mxu0 %v200
    %320 = vmatpush.bf16.msra.mxu0 %v193
    %321 = vmatmul.bf16.gmra.mxu0 %v246
    %v322 = vpop.f32.mrf.mxu0
    %v323 = vadd.f32 %v91, %v322
    %v324 = vpop.f32.mrf.mxu0
    %325 = vdwg.mxu0
    %326 = vmatpush.bf16.msra.mxu0 0
    %327 = vmatpush.bf16.msra.mxu0 0
    %328 = vmatpush.bf16.msra.mxu0 0
    %329 = vmatpush.bf16.msra.mxu0 0
    %330 = vmatpush.bf16.msra.mxu0 %v215
    %331 = vmatpush.bf16.msra.mxu0 %v208
    %332 = vmatpush.bf16.msra.mxu0 %v201
    %333 = vmatpush.bf16.msra.mxu0 %v194
    %334 = vmatmul.bf16.gmra.mxu0 %v246
    %v335 = vpop.f32.mrf.mxu0
    %v336 = vadd.f32 %v92, %v335
    %v337 = vpop.f32.mrf.mxu0
    %338 = vdwg.mxu0
    %339 = vst [vmem:[#allocation2] sm:$0xff] %v258
    %340 = vst [vmem:[#allocation2 + $0x8] sm:$0xff] %v271
    %341 = vst [vmem:[#allocation2 + $0x10] sm:$0xff] %v284
    %342 = vst [vmem:[#allocation2 + $0x18] sm:$0xff] %v297
    %343 = vst [vmem:[#allocation2 + $0x20] sm:$0xff] %v310
    %344 = vst [vmem:[#allocation2 + $0x28] sm:$0xff] %v323
    %345 = vst [vmem:[#allocation2 + $0x30] sm:$0xff] %v336
    // Predicated region
    $region22: #{decoder_forward.1} parent=1 // pred_check
      _
    $region23: #{decoder_forward.1} parent=1 // pred_check_branch
      %347 = sbr.rel (0) target = $region25
    $region24: #{decoder_forward.1} parent=1 // pred_region
      %349 = vsyncadd [#allocation3], 0
      %s351 = sshll.u32 [#allocation2], 4
      %s352 = int_to_ptr.vmem [resolvable:$true] %s351
      %s353 = sshll.u32 %s5, 4
      %s354 = int_to_ptr.hbm [resolvable:$true] %s353
      %356 = dma.vmem_to_hbm [thread:$0]  %s352, 896, %s354, [#allocation3]
    $region25: #{decoder_forward.1} parent=1 // pred_fallthru
      _
    // Predicated region
    $region26: #{decoder_forward.1} parent=1 // pred_check
      _
    $region27: #{decoder_forward.1} parent=1 // pred_check_branch
      %358 = sbr.rel (0) target = $region29
    $region28: #{decoder_forward.1} parent=1 // pred_region
      %360 = dma.done [#allocation3], 896
    $region29: #{decoder_forward.1} parent=1 // pred_fallthru
      _
    %361 = vsyncpa [#allocation3], 1

</llo_original>
